<compile_context>
chip_gen: v5e
topology: v5e:2x2
jax: 0.10.0
libtpu: 0.0.40
codegen_flags: <defaults>
</compile_context>

<pallas_src>
import functools

import jax
import jax.numpy as jnp
from jax.experimental import pallas as pl
from jax.experimental.pallas import tpu as pltpu

_LANE = 128
_TM_CAP = 1024   # row-tile cap
_TK_CAP = 2048   # k-tile cap


def _round_up(v, m):
    return (v + m - 1) // m * m


def _pick_tile(n_pad, cap):
    """Largest multiple of 128 that divides n_pad and is <= cap (>= 128)."""
    t = min(cap, n_pad)
    t -= t % _LANE
    while n_pad % t:
        t -= _LANE
    return t


# ---------------------------------------------------------------------------
# Pallas kernel: one GCN layer, streaming only A_hat over a (row, k) grid.
#   out[i, :] = act( (sum_k A[i, k] @ feat[k, :]) @ W + b )
# ---------------------------------------------------------------------------
def _gcn_layer_kernel(a_ref, feat_ref, w_ref, b_ref, out_ref, acc_ref, *,
                      apply_relu, tk):
    k = pl.program_id(1)

    @pl.when(k == 0)
    def _():
        acc_ref[...] = jnp.zeros_like(acc_ref)

    # Streamed bf16 A_hat tile against the VMEM-resident bf16 features; f32 acc.
    start = pl.multiple_of(k * tk, _LANE)
    feat = feat_ref[pl.ds(start, tk), :]
    acc_ref[...] += jnp.dot(a_ref[...], feat,
                            preferred_element_type=jnp.float32)

    @pl.when(k == pl.num_programs(1) - 1)
    def _():
        # Fused epilogue, once per row tile: single-pass bf16 MXU projection,
        # f32 bias (+ ReLU), lane-dense store in the output dtype.
        y = jnp.dot(acc_ref[...].astype(jnp.bfloat16), w_ref[...],
                    preferred_element_type=jnp.float32) + b_ref[...]
        if apply_relu:
            y = jnp.maximum(y, 0.0)
        out_ref[...] = y.astype(out_ref.dtype)


def _gcn_layer(a_bf, feat_bf, w_bf, b, *, apply_relu, out_dtype, tm, tk):
    n_pad = a_bf.shape[0]
    f_in = feat_bf.shape[1]
    f_out = w_bf.shape[1]
    grid = (n_pad // tm, n_pad // tk)
    n_steps = grid[0] * grid[1]

    # 3-deep A buffering hides the heavier last-k (epilogue) step; fall back to
    # default double-buffering on trivially small grids.
    a_bufs = 3 if n_steps >= 3 else 2
    if a_bufs > 2:
        a_spec = pl.BlockSpec((tm, tk), lambda i, k: (i, k),
                              pipeline_mode=pl.Buffered(a_bufs))
    else:
        a_spec = pl.BlockSpec((tm, tk), lambda i, k: (i, k))

    out_itemsize = jnp.dtype(out_dtype).itemsize
    vmem_bytes = (a_bufs * tm * tk * 2               # streamed A_hat buffers (bf16)
                  + n_pad * f_in * 2                 # resident features (bf16)
                  + f_in * f_out * 2 + f_out * 4     # resident W (bf16) + bias (f32)
                  + tm * f_in * 4                    # f32 accumulator scratch
                  + 2 * tm * f_out * out_itemsize)   # double-buffered output
    vmem_limit = min(48 * 1024 * 1024,
                     max(32 * 1024 * 1024, vmem_bytes * 3 // 2))

    flops = 2 * n_pad * n_pad * f_in + 2 * n_pad * f_in * f_out
    bytes_accessed = (a_bf.size * 2          # A_hat, read exactly once
                      + feat_bf.size * 2     # features, read exactly once (resident)
                      + w_bf.size * 2 + b.size * 4
                      + n_pad * f_out * out_itemsize)

    kernel = functools.partial(_gcn_layer_kernel, apply_relu=apply_relu, tk=tk)
    return pl.pallas_call(
        kernel,
        out_shape=jax.ShapeDtypeStruct((n_pad, f_out), out_dtype),
        grid_spec=pltpu.PrefetchScalarGridSpec(
            num_scalar_prefetch=0,
            grid=grid,
            in_specs=[
                a_spec,                                            # A_hat (streamed)
                pl.BlockSpec((n_pad, f_in), lambda i, k: (0, 0)),  # features (resident)
                pl.BlockSpec((f_in, f_out), lambda i, k: (0, 0)),  # W (resident, bf16)
                pl.BlockSpec((1, f_out), lambda i, k: (0, 0)),     # bias (resident, f32)
            ],
            out_specs=pl.BlockSpec((tm, f_out), lambda i, k: (i, 0)),
            scratch_shapes=[pltpu.VMEM((tm, f_in), jnp.float32)],
        ),
        compiler_params=pltpu.CompilerParams(
            dimension_semantics=("parallel", "arbitrary"),
            vmem_limit_bytes=vmem_limit),
        cost_estimate=pl.CostEstimate(flops=flops, transcendentals=0,
                                      bytes_accessed=bytes_accessed),
    )(a_bf, feat_bf, w_bf, b)


# ---------------------------------------------------------------------------
# Graph normalization (PyG gcn_norm semantics), built directly at padded shape.
# ---------------------------------------------------------------------------
def _build_a_hat(n, n_pad, edge_index, dtype):
    """A_hat[dst, src] = deg^-1/2[dst] * deg^-1/2[src], padded rows/cols all-zero."""
    src = edge_index[0]
    dst = edge_index[1]
    ew = jnp.where(src == dst, 0.0, 1.0).astype(jnp.float32)   # drop explicit self loops
    real = jnp.arange(n_pad) < n
    deg = jnp.zeros((n_pad,), jnp.float32).at[dst].add(ew)
    deg = deg + jnp.where(real, 1.0, 0.0)                      # +1 = added self loop
    dinv = jnp.where(real, jax.lax.rsqrt(jnp.maximum(deg, 1.0e-30)), 0.0)
    vals = (ew * dinv[dst] * dinv[src]).astype(dtype)
    a = jnp.zeros((n_pad, n_pad), dtype).at[dst, src].add(vals)
    ids = jnp.arange(n_pad)
    a = a.at[ids, ids].add(jnp.where(real, dinv * dinv, 0.0).astype(dtype))
    return a


# ---------------------------------------------------------------------------
# Forward pass (fully jitted).
# ---------------------------------------------------------------------------
@jax.jit
def gnn_forward(x, edge_index, w1, b1, w2, b2):
    """x: [N, F_in] float32, edge_index: [2, E] int32.  Returns [N, F_out] float32."""
    n, in_f = x.shape
    hid = w1.shape[1]
    out_f = w2.shape[1]

    n_pad = _round_up(n, _LANE)
    tm = _pick_tile(n_pad, _TM_CAP)
    tk = _pick_tile(n_pad, _TK_CAP)
    f_in_pad = _round_up(in_f, _LANE)
    hid_pad = _round_up(hid, _LANE)
    out_pad = _round_up(out_f, _LANE)

    # A_hat built once, at padded shape, directly in bf16 (no extra O(N^2) passes).
    a_bf = _build_a_hat(n, n_pad, edge_index, jnp.bfloat16)

    x_bf = jnp.zeros((n_pad, f_in_pad), jnp.bfloat16).at[:n, :in_f].set(
        x.astype(jnp.bfloat16))
    w1_bf = jnp.zeros((f_in_pad, hid_pad), jnp.bfloat16).at[:in_f, :hid].set(
        w1.astype(jnp.bfloat16))
    b1_p = jnp.zeros((1, hid_pad), jnp.float32).at[0, :hid].set(b1)
    w2_bf = jnp.zeros((hid_pad, out_pad), jnp.bfloat16).at[:hid, :out_f].set(
        w2.astype(jnp.bfloat16))
    b2_p = jnp.zeros((1, out_pad), jnp.float32).at[0, :out_f].set(b2)

    # Layer 1 emits bf16 hidden state directly; layer 2 emits f32 logits.
    h_bf = _gcn_layer(a_bf, x_bf, w1_bf, b1_p,
                      apply_relu=True, out_dtype=jnp.bfloat16, tm=tm, tk=tk)
    out = _gcn_layer(a_bf, h_bf, w2_bf, b2_p,
                     apply_relu=False, out_dtype=jnp.float32, tm=tm, tk=tk)
    return out[:n, :out_f]


# ---------------------------------------------------------------------------
# Pure-JAX references.
# ---------------------------------------------------------------------------
def _reference(x, edge_index, w1, b1, w2, b2, *, quantize):
    n = x.shape[0]
    if quantize:
        # Mirror the kernel's quantization points exactly (bf16 A/X/W/h, f32 math).
        bf = lambda a: a.astype(jnp.bfloat16).astype(jnp.float32)
        a = _build_a_hat(n, n, edge_index, jnp.bfloat16).astype(jnp.float32)
        ax = a @ bf(x)
        h = jnp.maximum(bf(ax) @ bf(w1) + b1, 0.0)
        ah = a @ bf(h)
        return bf(ah) @ bf(w2) + b2
    a = _build_a_hat(n, n, edge_index, jnp.float32)
    h = jnp.maximum((a @ x) @ w1 + b1, 0.0)
    return (a @ h) @ w2 + b2


if __name__ == "__main__":
    IN_F, HID, OUT_F = 18, 32, 8   # in_features (geojson layers), hidden_dim, out_features

    def make_inputs(key, n, e):
        k_x, k_e1, k_e2, k_w1, k_b1, k_w2, k_b2 = jax.random.split(key, 7)
        # binary node features, like int((x, y) in preloaded_features[feature])
        x = (jax.random.uniform(k_x, (n, IN_F)) > 0.5).astype(jnp.float32)
        src = jax.random.randint(k_e1, (e,), 0, n, dtype=jnp.int32)
        dst = jax.random.randint(k_e2, (e,), 0, n, dtype=jnp.int32)
        edge_index = jnp.stack([src, dst], axis=0)
        w1 = jax.random.normal(k_w1, (IN_F, HID), jnp.float32) * 0.1
        b1 = jax.random.normal(k_b1, (HID,), jnp.float32) * 0.1
        w2 = jax.random.normal(k_w2, (HID, OUT_F), jnp.float32) * 0.1
        b2 = jax.random.normal(k_b2, (OUT_F,), jnp.float32) * 0.1
        return x, edge_index, w1, b1, w2, b2

    # 1) Small, module-consistent shapes (single-tile path).
    args = make_inputs(jax.random.PRNGKey(0), 16, 24)
    out = jax.block_until_ready(gnn_forward(*args))
    assert out.shape == (16, OUT_F)
    ref_q = _reference(*args, quantize=True)
    assert jnp.allclose(out, ref_q, atol=1e-2, rtol=1e-2), "small: mismatch vs quantized ref"
    ref_f = _reference(*args, quantize=False)
    assert jnp.allclose(out, ref_f, atol=5e-2, rtol=5e-2), "small: mismatch vs f32 ref"

    # 2) Multi-tile coverage check: exercises the streamed-A grid, k-accumulation
    #    and the 3-deep buffered A stream (n_pad=2304 -> tm=768, tk=1152, grid=(3,2)).
    args2 = make_inputs(jax.random.PRNGKey(1), 2304, 9000)
    out2 = jax.block_until_ready(gnn_forward(*args2))
    assert out2.shape == (2304, OUT_F)
    ref2_q = _reference(*args2, quantize=True)
    assert jnp.allclose(out2, ref2_q, atol=2e-2, rtol=2e-2), "tiled: mismatch vs quantized ref"

    print("KERNEL_OK")
</pallas_src>

<mosaic_0001>
module attributes {stable_mosaic.version = 11 : i64} {
  func.func @_gcn_layer_kernel(%arg0: i32, %arg1: i32, %arg2: memref<128x128xbf16, #tpu.memory_space<vmem>>, %arg3: memref<128x128xbf16, #tpu.memory_space<vmem>>, %arg4: memref<128x128xbf16, #tpu.memory_space<vmem>>, %arg5: memref<1x128xf32, #tpu.memory_space<vmem>>, %arg6: memref<128x128xbf16, #tpu.memory_space<vmem>>, %arg7: memref<128x128xf32, #tpu.memory_space<vmem>>) attributes {dimension_semantics = [#tpu.dimension_semantics<parallel>, #tpu.dimension_semantics<arbitrary>], iteration_bounds = array<i64: 1, 1>, scalar_prefetch = 0 : i64, scratch_operands = 1 : i64, tpu.core_type = #tpu.core_type<tc>, window_params = [{transform_indices = @transform_0, window_bounds = array<i64: 128, 128>}, {pipeline_mode = #tpu.pipeline_mode<synchronous>, transform_indices = @transform_1, window_bounds = array<i64: 128, 128>}, {pipeline_mode = #tpu.pipeline_mode<synchronous>, transform_indices = @transform_2, window_bounds = array<i64: 128, 128>}, {pipeline_mode = #tpu.pipeline_mode<synchronous>, transform_indices = @transform_3, window_bounds = array<i64: 1, 128>}, {transform_indices = @transform_4, window_bounds = array<i64: 128, 128>}]} {
    %c0_i32 = arith.constant 0 : i32
    %0 = arith.cmpi eq, %arg1, %c0_i32 : i32
    %1 = arith.extui %0 : i1 to i32
    %c0_i32_0 = arith.constant 0 : i32
    %2 = arith.cmpi ne, %1, %c0_i32_0 : i32
    scf.if %2 {
      %cst_9 = arith.constant 0.000000e+00 : f32
      %15 = vector.broadcast %cst_9 : f32 to vector<128x128xf32>
      %c0_10 = arith.constant 0 : index
      %c0_11 = arith.constant 0 : index
      %16 = vector.load %arg7[%c0_10, %c0_11] : memref<128x128xf32, #tpu.memory_space<vmem>>, vector<128x128xf32>
      tpu.vector_store %arg7[%c0_10, %c0_11], %15 {strides = array<i32>} : memref<128x128xf32, #tpu.memory_space<vmem>>, vector<128x128xf32>,
    } else {
    }
    %c128_i32 = arith.constant 128 : i32
    %3 = arith.muli %arg1, %c128_i32 : i32
    %4 = tpu.assume_multiple %3, 128 : i32
    %5 = arith.index_cast %4 : i32 to index
    %c0 = arith.constant 0 : index
    %6 = vector.load %arg3[%5, %c0] : memref<128x128xbf16, #tpu.memory_space<vmem>>, vector<128x128xbf16>
    %c0_1 = arith.constant 0 : index
    %c0_2 = arith.constant 0 : index
    %7 = vector.load %arg7[%c0_1, %c0_2] : memref<128x128xf32, #tpu.memory_space<vmem>>, vector<128x128xf32>
    %c0_3 = arith.constant 0 : index
    %c0_4 = arith.constant 0 : index
    %8 = vector.load %arg2[%c0_3, %c0_4] : memref<128x128xbf16, #tpu.memory_space<vmem>>, vector<128x128xbf16>
    %cst = arith.constant dense<0.000000e+00> : vector<128x128xf32>
    %9 = tpu.matmul %8, %6, %cst {dimension_numbers = #tpu.dot_dimension_numbers<[1], [0], [0], [1], [0, 0, 1, 1], [], []>} : vector<128x128xbf16>, vector<128x128xbf16>, vector<128x128xf32> -> vector<128x128xf32>
    %10 = arith.addf %7, %9 : vector<128x128xf32>
    %c0_5 = arith.constant 0 : index
    %c0_6 = arith.constant 0 : index
    %11 = vector.load %arg7[%c0_5, %c0_6] : memref<128x128xf32, #tpu.memory_space<vmem>>, vector<128x128xf32>
    tpu.vector_store %arg7[%c0_5, %c0_6], %10 {strides = array<i32>} : memref<128x128xf32, #tpu.memory_space<vmem>>, vector<128x128xf32>,
    %c0_i32_7 = arith.constant 0 : i32
    %12 = arith.cmpi eq, %arg1, %c0_i32_7 : i32
    %13 = arith.extui %12 : i1 to i32
    %c0_i32_8 = arith.constant 0 : i32
    %14 = arith.cmpi ne, %13, %c0_i32_8 : i32
    scf.if %14 {
      %c0_9 = arith.constant 0 : index
      %c0_10 = arith.constant 0 : index
      %15 = vector.load %arg7[%c0_9, %c0_10] : memref<128x128xf32, #tpu.memory_space<vmem>>, vector<128x128xf32>
      %16 = arith.truncf %15 : vector<128x128xf32> to vector<128x128xbf16>
      %c0_11 = arith.constant 0 : index
      %c0_12 = arith.constant 0 : index
      %17 = vector.load %arg4[%c0_11, %c0_12] : memref<128x128xbf16, #tpu.memory_space<vmem>>, vector<128x128xbf16>
      %cst_13 = arith.constant dense<0.000000e+00> : vector<128x128xf32>
      %18 = tpu.matmul %16, %17, %cst_13 {dimension_numbers = #tpu.dot_dimension_numbers<[1], [0], [0], [1], [0, 0, 1, 1], [], []>} : vector<128x128xbf16>, vector<128x128xbf16>, vector<128x128xf32> -> vector<128x128xf32>
      %c0_14 = arith.constant 0 : index
      %c0_15 = arith.constant 0 : index
      %19 = vector.load %arg5[%c0_14, %c0_15] : memref<1x128xf32, #tpu.memory_space<vmem>>, vector<1x128xf32>
      %20 = vector.broadcast %19 : vector<1x128xf32> to vector<128x128xf32>
      %21 = arith.addf %18, %20 : vector<128x128xf32>
      %cst_16 = arith.constant 0.000000e+00 : f32
      %22 = vector.broadcast %cst_16 : f32 to vector<128x128xf32>
      %23 = arith.maximumf %21, %22 : vector<128x128xf32>
      %24 = arith.truncf %23 : vector<128x128xf32> to vector<128x128xbf16>
      %c0_17 = arith.constant 0 : index
      %c0_18 = arith.constant 0 : index
      %25 = vector.load %arg6[%c0_17, %c0_18] : memref<128x128xbf16, #tpu.memory_space<vmem>>, vector<128x128xbf16>
      tpu.vector_store %arg6[%c0_17, %c0_18], %24 {strides = array<i32>} : memref<128x128xbf16, #tpu.memory_space<vmem>>, vector<128x128xbf16>,
    } else {
    }
    return
  }
  func.func @transform_0(%arg0: i32, %arg1: i32) -> (i32, i32) {
    %c0_i32 = arith.constant 0 : i32
    return %arg0, %arg1 : i32, i32
  }
  func.func @transform_1(%arg0: i32, %arg1: i32) -> (i32, i32) {
    %c0_i32 = arith.constant 0 : i32
    %c0_i32_0 = arith.constant 0 : i32
    %c0_i32_1 = arith.constant 0 : i32
    return %c0_i32, %c0_i32_0 : i32, i32
  }
  func.func @transform_2(%arg0: i32, %arg1: i32) -> (i32, i32) {
    %c0_i32 = arith.constant 0 : i32
    %c0_i32_0 = arith.constant 0 : i32
    %c0_i32_1 = arith.constant 0 : i32
    return %c0_i32, %c0_i32_0 : i32, i32
  }
  func.func @transform_3(%arg0: i32, %arg1: i32) -> (i32, i32) {
    %c0_i32 = arith.constant 0 : i32
    %c0_i32_0 = arith.constant 0 : i32
    %c0_i32_1 = arith.constant 0 : i32
    return %c0_i32, %c0_i32_0 : i32, i32
  }
  func.func @transform_4(%arg0: i32, %arg1: i32) -> (i32, i32) {
    %c0_i32 = arith.constant 0 : i32
    %c0_i32_0 = arith.constant 0 : i32
    return %arg0, %c0_i32 : i32, i32
  }
}

module attributes {stable_mosaic.version = 11 : i64} {
  func.func @_gcn_layer_kernel(%arg0: i32, %arg1: i32, %arg2: memref<128x128xbf16, #tpu.memory_space<vmem>>, %arg3: memref<128x128xbf16, #tpu.memory_space<vmem>>, %arg4: memref<128x128xbf16, #tpu.memory_space<vmem>>, %arg5: memref<1x128xf32, #tpu.memory_space<vmem>>, %arg6: memref<128x128xf32, #tpu.memory_space<vmem>>, %arg7: memref<128x128xf32, #tpu.memory_space<vmem>>) attributes {dimension_semantics = [#tpu.dimension_semantics<parallel>, #tpu.dimension_semantics<arbitrary>], iteration_bounds = array<i64: 1, 1>, scalar_prefetch = 0 : i64, scratch_operands = 1 : i64, tpu.core_type = #tpu.core_type<tc>, window_params = [{transform_indices = @transform_0, window_bounds = array<i64: 128, 128>}, {pipeline_mode = #tpu.pipeline_mode<synchronous>, transform_indices = @transform_1, window_bounds = array<i64: 128, 128>}, {pipeline_mode = #tpu.pipeline_mode<synchronous>, transform_indices = @transform_2, window_bounds = array<i64: 128, 128>}, {pipeline_mode = #tpu.pipeline_mode<synchronous>, transform_indices = @transform_3, window_bounds = array<i64: 1, 128>}, {transform_indices = @transform_4, window_bounds = array<i64: 128, 128>}]} {
    %c0_i32 = arith.constant 0 : i32
    %0 = arith.cmpi eq, %arg1, %c0_i32 : i32
    %1 = arith.extui %0 : i1 to i32
    %c0_i32_0 = arith.constant 0 : i32
    %2 = arith.cmpi ne, %1, %c0_i32_0 : i32
    scf.if %2 {
      %cst_9 = arith.constant 0.000000e+00 : f32
      %15 = vector.broadcast %cst_9 : f32 to vector<128x128xf32>
      %c0_10 = arith.constant 0 : index
      %c0_11 = arith.constant 0 : index
      %16 = vector.load %arg7[%c0_10, %c0_11] : memref<128x128xf32, #tpu.memory_space<vmem>>, vector<128x128xf32>
      tpu.vector_store %arg7[%c0_10, %c0_11], %15 {strides = array<i32>} : memref<128x128xf32, #tpu.memory_space<vmem>>, vector<128x128xf32>,
    } else {
    }
    %c128_i32 = arith.constant 128 : i32
    %3 = arith.muli %arg1, %c128_i32 : i32
    %4 = tpu.assume_multiple %3, 128 : i32
    %5 = arith.index_cast %4 : i32 to index
    %c0 = arith.constant 0 : index
    %6 = vector.load %arg3[%5, %c0] : memref<128x128xbf16, #tpu.memory_space<vmem>>, vector<128x128xbf16>
    %c0_1 = arith.constant 0 : index
    %c0_2 = arith.constant 0 : index
    %7 = vector.load %arg7[%c0_1, %c0_2] : memref<128x128xf32, #tpu.memory_space<vmem>>, vector<128x128xf32>
    %c0_3 = arith.constant 0 : index
    %c0_4 = arith.constant 0 : index
    %8 = vector.load %arg2[%c0_3, %c0_4] : memref<128x128xbf16, #tpu.memory_space<vmem>>, vector<128x128xbf16>
    %cst = arith.constant dense<0.000000e+00> : vector<128x128xf32>
    %9 = tpu.matmul %8, %6, %cst {dimension_numbers = #tpu.dot_dimension_numbers<[1], [0], [0], [1], [0, 0, 1, 1], [], []>} : vector<128x128xbf16>, vector<128x128xbf16>, vector<128x128xf32> -> vector<128x128xf32>
    %10 = arith.addf %7, %9 : vector<128x128xf32>
    %c0_5 = arith.constant 0 : index
    %c0_6 = arith.constant 0 : index
    %11 = vector.load %arg7[%c0_5, %c0_6] : memref<128x128xf32, #tpu.memory_space<vmem>>, vector<128x128xf32>
    tpu.vector_store %arg7[%c0_5, %c0_6], %10 {strides = array<i32>} : memref<128x128xf32, #tpu.memory_space<vmem>>, vector<128x128xf32>,
    %c0_i32_7 = arith.constant 0 : i32
    %12 = arith.cmpi eq, %arg1, %c0_i32_7 : i32
    %13 = arith.extui %12 : i1 to i32
    %c0_i32_8 = arith.constant 0 : i32
    %14 = arith.cmpi ne, %13, %c0_i32_8 : i32
    scf.if %14 {
      %c0_9 = arith.constant 0 : index
      %c0_10 = arith.constant 0 : index
      %15 = vector.load %arg7[%c0_9, %c0_10] : memref<128x128xf32, #tpu.memory_space<vmem>>, vector<128x128xf32>
      %16 = arith.truncf %15 : vector<128x128xf32> to vector<128x128xbf16>
      %c0_11 = arith.constant 0 : index
      %c0_12 = arith.constant 0 : index
      %17 = vector.load %arg4[%c0_11, %c0_12] : memref<128x128xbf16, #tpu.memory_space<vmem>>, vector<128x128xbf16>
      %cst_13 = arith.constant dense<0.000000e+00> : vector<128x128xf32>
      %18 = tpu.matmul %16, %17, %cst_13 {dimension_numbers = #tpu.dot_dimension_numbers<[1], [0], [0], [1], [0, 0, 1, 1], [], []>} : vector<128x128xbf16>, vector<128x128xbf16>, vector<128x128xf32> -> vector<128x128xf32>
      %c0_14 = arith.constant 0 : index
      %c0_15 = arith.constant 0 : index
      %19 = vector.load %arg5[%c0_14, %c0_15] : memref<1x128xf32, #tpu.memory_space<vmem>>, vector<1x128xf32>
      %20 = vector.broadcast %19 : vector<1x128xf32> to vector<128x128xf32>
      %21 = arith.addf %18, %20 : vector<128x128xf32>
      %c0_16 = arith.constant 0 : index
      %c0_17 = arith.constant 0 : index
      %22 = vector.load %arg6[%c0_16, %c0_17] : memref<128x128xf32, #tpu.memory_space<vmem>>, vector<128x128xf32>
      tpu.vector_store %arg6[%c0_16, %c0_17], %21 {strides = array<i32>} : memref<128x128xf32, #tpu.memory_space<vmem>>, vector<128x128xf32>,
    } else {
    }
    return
  }
  func.func @transform_0(%arg0: i32, %arg1: i32) -> (i32, i32) {
    %c0_i32 = arith.constant 0 : i32
    return %arg0, %arg1 : i32, i32
  }
  func.func @transform_1(%arg0: i32, %arg1: i32) -> (i32, i32) {
    %c0_i32 = arith.constant 0 : i32
    %c0_i32_0 = arith.constant 0 : i32
    %c0_i32_1 = arith.constant 0 : i32
    return %c0_i32, %c0_i32_0 : i32, i32
  }
  func.func @transform_2(%arg0: i32, %arg1: i32) -> (i32, i32) {
    %c0_i32 = arith.constant 0 : i32
    %c0_i32_0 = arith.constant 0 : i32
    %c0_i32_1 = arith.constant 0 : i32
    return %c0_i32, %c0_i32_0 : i32, i32
  }
  func.func @transform_3(%arg0: i32, %arg1: i32) -> (i32, i32) {
    %c0_i32 = arith.constant 0 : i32
    %c0_i32_0 = arith.constant 0 : i32
    %c0_i32_1 = arith.constant 0 : i32
    return %c0_i32, %c0_i32_0 : i32, i32
  }
  func.func @transform_4(%arg0: i32, %arg1: i32) -> (i32, i32) {
    %c0_i32 = arith.constant 0 : i32
    %c0_i32_0 = arith.constant 0 : i32
    return %arg0, %c0_i32 : i32, i32
  }
}

</mosaic_0001>

<llo_original>
// kernel: gnn_forward.3
$region0: #{gnn_forward.3}
  #allocation0 [shape = 'u32[]', space=smem, size = 0x4, offset = 0x4, fixed_abs, tag = 'smem constant byte address 0x4 - core index']
  #allocation1 [shape = 'u32[72,128]{1,0:T(1,128)}', space=vmem, size = 0x9000, scoped, tag = 'internal scratch']
  #allocation2 [shape = 'f32[128,128]{1,0:T(8,128)}', space=vmem, size = 0x10000, scoped, tag = 'scratch operand']
  %s0 = inlined_call_operand.vmem [shape: bf16[128,128], index: 0, kind: input, shape index: {}]
  %s1 = inlined_call_operand.vmem [shape: bf16[128,128], index: 1, kind: input, shape index: {}]
  %s2 = inlined_call_operand.vmem [shape: bf16[128,128], index: 2, kind: input, shape index: {}]
  %s3 = inlined_call_operand.vmem [shape: f32[1,128], index: 3, kind: input, shape index: {}]
  %s4 = inlined_call_operand.vmem [shape: f32[128,128], index: 4, kind: output, shape index: {}]
  %s5 = sld [smem:[#allocation0]]
  $region34: #{gnn_forward.3} parent=0
    _
  %s7 = ssub.s32 1, %s5
  %s8 = scalar_select 0, %s7, %s5
  // Predicated region
  $region2: #{gnn_forward.3} parent=0 // pred_check
    _
  $region3: #{gnn_forward.3} parent=0 // pred_check_branch
    %10 = sbr.rel (0) target = $region5
  $region4: #{gnn_forward.3} parent=0 // pred_region
    _
  $region5: #{gnn_forward.3} parent=0 // pred_fallthru
    _
  // Predicated region
  $region6: #{gnn_forward.3} parent=0 // pred_check
    _
  $region7: #{gnn_forward.3} parent=0 // pred_check_branch
    %12 = sbr.rel (0) target = $region9
  $region8: #{gnn_forward.3} parent=0 // pred_region
    _
  $region9: #{gnn_forward.3} parent=0 // pred_fallthru
    _
  // Predicated region
  $region10: #{gnn_forward.3} parent=0 // pred_check
    _
  $region11: #{gnn_forward.3} parent=0 // pred_check_branch
    %14 = sbr.rel (0) target = $region13
  $region12: #{gnn_forward.3} parent=0 // pred_region
    _
  $region13: #{gnn_forward.3} parent=0 // pred_fallthru
    _
  // Predicated region
  $region14: #{gnn_forward.3} parent=0 // pred_check
    _
  $region15: #{gnn_forward.3} parent=0 // pred_check_branch
    %16 = sbr.rel (0) target = $region17
  $region16: #{gnn_forward.3} parent=0 // pred_region
    _
  $region17: #{gnn_forward.3} parent=0 // pred_fallthru
    _
  %p17 = scmp.eq.s32.totalorder 0, 0
  // Predicated region
  $region18: #{gnn_forward.3} parent=0 // pred_check
    %p18 = pneg %p17
  $region19: #{gnn_forward.3} parent=0 // pred_check_branch
    %20 = sbr.rel (%p18) target = $region21
  $region20: #{gnn_forward.3} parent=0 // pred_region
    %21 = vst [vmem:[#allocation2] sm:$0xff] 0.0
    %22 = vst [vmem:[#allocation2 + $0x8] sm:$0xff] 0.0
    %23 = vst [vmem:[#allocation2 + $0x10] sm:$0xff] 0.0
    %24 = vst [vmem:[#allocation2 + $0x18] sm:$0xff] 0.0
    %25 = vst [vmem:[#allocation2 + $0x20] sm:$0xff] 0.0
    %26 = vst [vmem:[#allocation2 + $0x28] sm:$0xff] 0.0
    %27 = vst [vmem:[#allocation2 + $0x30] sm:$0xff] 0.0
    %28 = vst [vmem:[#allocation2 + $0x38] sm:$0xff] 0.0
    %29 = vst [vmem:[#allocation2 + $0x40] sm:$0xff] 0.0
    %30 = vst [vmem:[#allocation2 + $0x48] sm:$0xff] 0.0
    %31 = vst [vmem:[#allocation2 + $0x50] sm:$0xff] 0.0
    %32 = vst [vmem:[#allocation2 + $0x58] sm:$0xff] 0.0
    %33 = vst [vmem:[#allocation2 + $0x60] sm:$0xff] 0.0
    %34 = vst [vmem:[#allocation2 + $0x68] sm:$0xff] 0.0
    %35 = vst [vmem:[#allocation2 + $0x70] sm:$0xff] 0.0
    %36 = vst [vmem:[#allocation2 + $0x78] sm:$0xff] 0.0
  $region21: #{gnn_forward.3} parent=0 // pred_fallthru
    _
  %s37 = smul.u32 0, 128
  %s38 = sshra.s32 %s37, 3
  %s39 = sand.u32 %s37, 7
  %s40 = smul.addr %s38, 4
  %s41 = scalar_lea.vmem %s1, %s40
  %v42 = vld [vmem:[%s41] sm:$0xf]
  %v43 = vld [vmem:[%s41 + $0x4] sm:$0xf]
  %v44 = vld [vmem:[%s41 + $0x8] sm:$0xf]
  %v45 = vld [vmem:[%s41 + $0xc] sm:$0xf]
  %v46 = vld [vmem:[%s41 + $0x10] sm:$0xf]
  %v47 = vld [vmem:[%s41 + $0x14] sm:$0xf]
  %v48 = vld [vmem:[%s41 + $0x18] sm:$0xf]
  %v49 = vld [vmem:[%s41 + $0x1c] sm:$0xf]
  %v50 = vld [vmem:[%s41 + $0x20] sm:$0xf]
  %v51 = vld [vmem:[%s41 + $0x24] sm:$0xf]
  %v52 = vld [vmem:[%s41 + $0x28] sm:$0xf]
  %v53 = vld [vmem:[%s41 + $0x2c] sm:$0xf]
  %v54 = vld [vmem:[%s41 + $0x30] sm:$0xf]
  %v55 = vld [vmem:[%s41 + $0x34] sm:$0xf]
  %v56 = vld [vmem:[%s41 + $0x38] sm:$0xf]
  %v57 = vld [vmem:[%s41 + $0x3c] sm:$0xf]
  %v58 = vld [vmem:[#allocation2] sm:$0xff]
  %v59 = vld [vmem:[#allocation2 + $0x8] sm:$0xff]
  %v60 = vld [vmem:[#allocation2 + $0x10] sm:$0xff]
  %v61 = vld [vmem:[#allocation2 + $0x18] sm:$0xff]
  %v62 = vld [vmem:[#allocation2 + $0x20] sm:$0xff]
  %v63 = vld [vmem:[#allocation2 + $0x28] sm:$0xff]
  %v64 = vld [vmem:[#allocation2 + $0x30] sm:$0xff]
  %v65 = vld [vmem:[#allocation2 + $0x38] sm:$0xff]
  %v66 = vld [vmem:[#allocation2 + $0x40] sm:$0xff]
  %v67 = vld [vmem:[#allocation2 + $0x48] sm:$0xff]
  %v68 = vld [vmem:[#allocation2 + $0x50] sm:$0xff]
  %v69 = vld [vmem:[#allocation2 + $0x58] sm:$0xff]
  %v70 = vld [vmem:[#allocation2 + $0x60] sm:$0xff]
  %v71 = vld [vmem:[#allocation2 + $0x68] sm:$0xff]
  %v72 = vld [vmem:[#allocation2 + $0x70] sm:$0xff]
  %v73 = vld [vmem:[#allocation2 + $0x78] sm:$0xff]
  %v74 = vld [vmem:[%s0] sm:$0xf]
  %v75 = vld [vmem:[%s0 + $0x4] sm:$0xf]
  %v76 = vld [vmem:[%s0 + $0x8] sm:$0xf]
  %v77 = vld [vmem:[%s0 + $0xc] sm:$0xf]
  %v78 = vld [vmem:[%s0 + $0x10] sm:$0xf]
  %v79 = vld [vmem:[%s0 + $0x14] sm:$0xf]
  %v80 = vld [vmem:[%s0 + $0x18] sm:$0xf]
  %v81 = vld [vmem:[%s0 + $0x1c] sm:$0xf]
  %v82 = vld [vmem:[%s0 + $0x20] sm:$0xf]
  %v83 = vld [vmem:[%s0 + $0x24] sm:$0xf]
  %v84 = vld [vmem:[%s0 + $0x28] sm:$0xf]
  %v85 = vld [vmem:[%s0 + $0x2c] sm:$0xf]
  %v86 = vld [vmem:[%s0 + $0x30] sm:$0xf]
  %v87 = vld [vmem:[%s0 + $0x34] sm:$0xf]
  %v88 = vld [vmem:[%s0 + $0x38] sm:$0xf]
  %v89 = vld [vmem:[%s0 + $0x3c] sm:$0xf]
  %v106 = vunpack.c.l.b16 %v74
  %v107 = vunpack.c.l.b16 %v75
  %v108 = vunpack.c.l.b16 %v76
  %v109 = vunpack.c.l.b16 %v77
  %v110 = vunpack.c.l.b16 %v78
  %v111 = vunpack.c.l.b16 %v79
  %v112 = vunpack.c.l.b16 %v80
  %v113 = vunpack.c.l.b16 %v81
  %v114 = vunpack.c.l.b16 %v82
  %v115 = vunpack.c.l.b16 %v83
  %v116 = vunpack.c.l.b16 %v84
  %v117 = vunpack.c.l.b16 %v85
  %v118 = vunpack.c.l.b16 %v86
  %v119 = vunpack.c.l.b16 %v87
  %v120 = vunpack.c.l.b16 %v88
  %v121 = vunpack.c.l.b16 %v89
  %v122 = vpack.c.b16 %v107, %v106
  %v123 = vpack.c.b16 %v109, %v108
  %v124 = vpack.c.b16 %v111, %v110
  %v125 = vpack.c.b16 %v113, %v112
  %v126 = vpack.c.b16 %v115, %v114
  %v127 = vpack.c.b16 %v117, %v116
  %v128 = vpack.c.b16 %v119, %v118
  %v129 = vpack.c.b16 %v121, %v120
  %v154 = vunpack.c.l.b16 %v42
  %v155 = vunpack.c.l.b16 %v43
  %v156 = vunpack.c.l.b16 %v44
  %v157 = vunpack.c.l.b16 %v45
  %v158 = vunpack.c.l.b16 %v46
  %v159 = vunpack.c.l.b16 %v47
  %v160 = vunpack.c.l.b16 %v48
  %v161 = vunpack.c.l.b16 %v49
  %v162 = vunpack.c.l.b16 %v50
  %v163 = vunpack.c.l.b16 %v51
  %v164 = vunpack.c.l.b16 %v52
  %v165 = vunpack.c.l.b16 %v53
  %v166 = vunpack.c.l.b16 %v54
  %v167 = vunpack.c.l.b16 %v55
  %v168 = vunpack.c.l.b16 %v56
  %v169 = vunpack.c.l.b16 %v57
  %v170 = vpack.c.b16 %v155, %v154
  %v171 = vpack.c.b16 %v157, %v156
  %v172 = vpack.c.b16 %v159, %v158
  %v173 = vpack.c.b16 %v161, %v160
  %v174 = vpack.c.b16 %v163, %v162
  %v175 = vpack.c.b16 %v165, %v164
  %v176 = vpack.c.b16 %v167, %v166
  %v177 = vpack.c.b16 %v169, %v168
  %186 = vmatpush.bf16.msra.mxu0 %v177
  %187 = vmatpush.bf16.msra.mxu0 %v176
  %188 = vmatpush.bf16.msra.mxu0 %v175
  %189 = vmatpush.bf16.msra.mxu0 %v174
  %190 = vmatpush.bf16.msra.mxu0 %v173
  %191 = vmatpush.bf16.msra.mxu0 %v172
  %192 = vmatpush.bf16.msra.mxu0 %v171
  %193 = vmatpush.bf16.msra.mxu0 %v170
  %194 = vmatmul.bf16.gmra.mxu0 %v122
  %v195 = vpop.f32.mrf.mxu0
  %v196 = vadd.f32 0.0, %v195
  %v197 = vpop.f32.mrf.mxu0
  %v198 = vadd.f32 0.0, %v197
  %199 = vmatmul.bf16.gmra.mxu0 %v123
  %v200 = vpop.f32.mrf.mxu0
  %v201 = vadd.f32 0.0, %v200
  %v202 = vpop.f32.mrf.mxu0
  %v203 = vadd.f32 0.0, %v202
  %204 = vmatmul.bf16.gmra.mxu0 %v124
  %v205 = vpop.f32.mrf.mxu0
  %v206 = vadd.f32 0.0, %v205
  %v207 = vpop.f32.mrf.mxu0
  %v208 = vadd.f32 0.0, %v207
  %209 = vmatmul.bf16.gmra.mxu0 %v125
  %v210 = vpop.f32.mrf.mxu0
  %v211 = vadd.f32 0.0, %v210
  %v212 = vpop.f32.mrf.mxu0
  %v213 = vadd.f32 0.0, %v212
  %214 = vmatmul.bf16.gmra.mxu0 %v126
  %v215 = vpop.f32.mrf.mxu0
  %v216 = vadd.f32 0.0, %v215
  %v217 = vpop.f32.mrf.mxu0
  %v218 = vadd.f32 0.0, %v217
  %219 = vmatmul.bf16.gmra.mxu0 %v127
  %v220 = vpop.f32.mrf.mxu0
  %v221 = vadd.f32 0.0, %v220
  %v222 = vpop.f32.mrf.mxu0
  %v223 = vadd.f32 0.0, %v222
  %224 = vmatmul.bf16.gmra.mxu0 %v128
  %v225 = vpop.f32.mrf.mxu0
  %v226 = vadd.f32 0.0, %v225
  %v227 = vpop.f32.mrf.mxu0
  %v228 = vadd.f32 0.0, %v227
  %229 = vmatmul.bf16.gmra.mxu0 %v129
  %v230 = vpop.f32.mrf.mxu0
  %v231 = vadd.f32 0.0, %v230
  %v232 = vpop.f32.mrf.mxu0
  %v233 = vadd.f32 0.0, %v232
  %234 = vdwg.mxu0
  %v235 = vadd.f32 %v58, %v196
  %v236 = vadd.f32 %v59, %v198
  %v237 = vadd.f32 %v60, %v201
  %v238 = vadd.f32 %v61, %v203
  %v239 = vadd.f32 %v62, %v206
  %v240 = vadd.f32 %v63, %v208
  %v241 = vadd.f32 %v64, %v211
  %v242 = vadd.f32 %v65, %v213
  %v243 = vadd.f32 %v66, %v216
  %v244 = vadd.f32 %v67, %v218
  %v245 = vadd.f32 %v68, %v221
  %v246 = vadd.f32 %v69, %v223
  %v247 = vadd.f32 %v70, %v226
  %v248 = vadd.f32 %v71, %v228
  %v249 = vadd.f32 %v72, %v231
  %v250 = vadd.f32 %v73, %v233
  %251 = vst [vmem:[#allocation2] sm:$0xff] %v235
  %252 = vst [vmem:[#allocation2 + $0x8] sm:$0xff] %v236
  %253 = vst [vmem:[#allocation2 + $0x10] sm:$0xff] %v237
  %254 = vst [vmem:[#allocation2 + $0x18] sm:$0xff] %v238
  %255 = vst [vmem:[#allocation2 + $0x20] sm:$0xff] %v239
  %256 = vst [vmem:[#allocation2 + $0x28] sm:$0xff] %v240
  %257 = vst [vmem:[#allocation2 + $0x30] sm:$0xff] %v241
  %258 = vst [vmem:[#allocation2 + $0x38] sm:$0xff] %v242
  %259 = vst [vmem:[#allocation2 + $0x40] sm:$0xff] %v243
  %260 = vst [vmem:[#allocation2 + $0x48] sm:$0xff] %v244
  %261 = vst [vmem:[#allocation2 + $0x50] sm:$0xff] %v245
  %262 = vst [vmem:[#allocation2 + $0x58] sm:$0xff] %v246
  %263 = vst [vmem:[#allocation2 + $0x60] sm:$0xff] %v247
  %264 = vst [vmem:[#allocation2 + $0x68] sm:$0xff] %v248
  %265 = vst [vmem:[#allocation2 + $0x70] sm:$0xff] %v249
  %266 = vst [vmem:[#allocation2 + $0x78] sm:$0xff] %v250
  // Predicated region
  $region22: #{gnn_forward.3} parent=0 // pred_check
    %p267 = pneg %p17
  $region23: #{gnn_forward.3} parent=0 // pred_check_branch
    %269 = sbr.rel (%p267) target = $region25
  $region24: #{gnn_forward.3} parent=0 // pred_region
    %v270 = vld [vmem:[#allocation2] sm:$0xff]
    %v271 = vld [vmem:[#allocation2 + $0x8] sm:$0xff]
    %v272 = vld [vmem:[#allocation2 + $0x10] sm:$0xff]
    %v273 = vld [vmem:[#allocation2 + $0x18] sm:$0xff]
    %v274 = vld [vmem:[#allocation2 + $0x20] sm:$0xff]
    %v275 = vld [vmem:[#allocation2 + $0x28] sm:$0xff]
    %v276 = vld [vmem:[#allocation2 + $0x30] sm:$0xff]
    %v277 = vld [vmem:[#allocation2 + $0x38] sm:$0xff]
    %v278 = vld [vmem:[#allocation2 + $0x40] sm:$0xff]
    %v279 = vld [vmem:[#allocation2 + $0x48] sm:$0xff]
    %v280 = vld [vmem:[#allocation2 + $0x50] sm:$0xff]
    %v281 = vld [vmem:[#allocation2 + $0x58] sm:$0xff]
    %v282 = vld [vmem:[#allocation2 + $0x60] sm:$0xff]
    %v283 = vld [vmem:[#allocation2 + $0x68] sm:$0xff]
    %v284 = vld [vmem:[#allocation2 + $0x70] sm:$0xff]
    %v285 = vld [vmem:[#allocation2 + $0x78] sm:$0xff]
    %v286 = vpack.c.bf16 %v271, %v270
    %v287 = vpack.c.bf16 %v273, %v272
    %v288 = vpack.c.bf16 %v275, %v274
    %v289 = vpack.c.bf16 %v277, %v276
    %v290 = vpack.c.bf16 %v279, %v278
    %v291 = vpack.c.bf16 %v281, %v280
    %v292 = vpack.c.bf16 %v283, %v282
    %v293 = vpack.c.bf16 %v285, %v284
    %v294 = vld [vmem:[%s2] sm:$0xf]
    %v295 = vld [vmem:[%s2 + $0x4] sm:$0xf]
    %v296 = vld [vmem:[%s2 + $0x8] sm:$0xf]
    %v297 = vld [vmem:[%s2 + $0xc] sm:$0xf]
    %v298 = vld [vmem:[%s2 + $0x10] sm:$0xf]
    %v299 = vld [vmem:[%s2 + $0x14] sm:$0xf]
    %v300 = vld [vmem:[%s2 + $0x18] sm:$0xf]
    %v301 = vld [vmem:[%s2 + $0x1c] sm:$0xf]
    %v302 = vld [vmem:[%s2 + $0x20] sm:$0xf]
    %v303 = vld [vmem:[%s2 + $0x24] sm:$0xf]
    %v304 = vld [vmem:[%s2 + $0x28] sm:$0xf]
    %v305 = vld [vmem:[%s2 + $0x2c] sm:$0xf]
    %v306 = vld [vmem:[%s2 + $0x30] sm:$0xf]
    %v307 = vld [vmem:[%s2 + $0x34] sm:$0xf]
    %v308 = vld [vmem:[%s2 + $0x38] sm:$0xf]
    %v309 = vld [vmem:[%s2 + $0x3c] sm:$0xf]
    %v310 = vld [vmem:[%s3] sm:$0x1]
    %v312 = vperm.slane %v310, 0
    %v330 = vunpack.c.l.b16 %v294
    %v331 = vunpack.c.l.b16 %v295
    %v332 = vunpack.c.l.b16 %v296
    %v333 = vunpack.c.l.b16 %v297
    %v334 = vunpack.c.l.b16 %v298
    %v335 = vunpack.c.l.b16 %v299
    %v336 = vunpack.c.l.b16 %v300
    %v337 = vunpack.c.l.b16 %v301
    %v338 = vunpack.c.l.b16 %v302
    %v339 = vunpack.c.l.b16 %v303
    %v340 = vunpack.c.l.b16 %v304
    %v341 = vunpack.c.l.b16 %v305
    %v342 = vunpack.c.l.b16 %v306
    %v343 = vunpack.c.l.b16 %v307
    %v344 = vunpack.c.l.b16 %v308
    %v345 = vunpack.c.l.b16 %v309
    %v346 = vpack.c.b16 %v331, %v330
    %v347 = vpack.c.b16 %v333, %v332
    %v348 = vpack.c.b16 %v335, %v334
    %v349 = vpack.c.b16 %v337, %v336
    %v350 = vpack.c.b16 %v339, %v338
    %v351 = vpack.c.b16 %v341, %v340
    %v352 = vpack.c.b16 %v343, %v342
    %v353 = vpack.c.b16 %v345, %v344
    %362 = vmatpush.bf16.msra.mxu0 %v353
    %363 = vmatpush.bf16.msra.mxu0 %v352
    %364 = vmatpush.bf16.msra.mxu0 %v351
    %365 = vmatpush.bf16.msra.mxu0 %v350
    %366 = vmatpush.bf16.msra.mxu0 %v349
    %367 = vmatpush.bf16.msra.mxu0 %v348
    %368 = vmatpush.bf16.msra.mxu0 %v347
    %369 = vmatpush.bf16.msra.mxu0 %v346
    %370 = vmatmul.bf16.gmra.mxu0 %v286
    %v371 = vpop.f32.mrf.mxu0
    %v372 = vadd.f32 %v312, %v371
    %v373 = vpop.f32.mrf.mxu0
    %v374 = vadd.f32 %v312, %v373
    %375 = vmatmul.bf16.gmra.mxu0 %v287
    %v376 = vpop.f32.mrf.mxu0
    %v377 = vadd.f32 %v312, %v376
    %v378 = vpop.f32.mrf.mxu0
    %v379 = vadd.f32 %v312, %v378
    %380 = vmatmul.bf16.gmra.mxu0 %v288
    %v381 = vpop.f32.mrf.mxu0
    %v382 = vadd.f32 %v312, %v381
    %v383 = vpop.f32.mrf.mxu0
    %v384 = vadd.f32 %v312, %v383
    %385 = vmatmul.bf16.gmra.mxu0 %v289
    %v386 = vpop.f32.mrf.mxu0
    %v387 = vadd.f32 %v312, %v386
    %v388 = vpop.f32.mrf.mxu0
    %v389 = vadd.f32 %v312, %v388
    %390 = vmatmul.bf16.gmra.mxu0 %v290
    %v391 = vpop.f32.mrf.mxu0
    %v392 = vadd.f32 %v312, %v391
    %v393 = vpop.f32.mrf.mxu0
    %v394 = vadd.f32 %v312, %v393
    %395 = vmatmul.bf16.gmra.mxu0 %v291
    %v396 = vpop.f32.mrf.mxu0
    %v397 = vadd.f32 %v312, %v396
    %v398 = vpop.f32.mrf.mxu0
    %v399 = vadd.f32 %v312, %v398
    %400 = vmatmul.bf16.gmra.mxu0 %v292
    %v401 = vpop.f32.mrf.mxu0
    %v402 = vadd.f32 %v312, %v401
    %v403 = vpop.f32.mrf.mxu0
    %v404 = vadd.f32 %v312, %v403
    %405 = vmatmul.bf16.gmra.mxu0 %v293
    %v406 = vpop.f32.mrf.mxu0
    %v407 = vadd.f32 %v312, %v406
    %v408 = vpop.f32.mrf.mxu0
    %v409 = vadd.f32 %v312, %v408
    %410 = vdwg.mxu0
    %411 = vst [vmem:[%s4] sm:$0xff] %v372
    %412 = vst [vmem:[%s4 + $0x8] sm:$0xff] %v374
    %413 = vst [vmem:[%s4 + $0x10] sm:$0xff] %v377
    %414 = vst [vmem:[%s4 + $0x18] sm:$0xff] %v379
    %415 = vst [vmem:[%s4 + $0x20] sm:$0xff] %v382
    %416 = vst [vmem:[%s4 + $0x28] sm:$0xff] %v384
    %417 = vst [vmem:[%s4 + $0x30] sm:$0xff] %v387
    %418 = vst [vmem:[%s4 + $0x38] sm:$0xff] %v389
    %419 = vst [vmem:[%s4 + $0x40] sm:$0xff] %v392
    %420 = vst [vmem:[%s4 + $0x48] sm:$0xff] %v394
    %421 = vst [vmem:[%s4 + $0x50] sm:$0xff] %v397
    %422 = vst [vmem:[%s4 + $0x58] sm:$0xff] %v399
    %423 = vst [vmem:[%s4 + $0x60] sm:$0xff] %v402
    %424 = vst [vmem:[%s4 + $0x68] sm:$0xff] %v404
    %425 = vst [vmem:[%s4 + $0x70] sm:$0xff] %v407
    %426 = vst [vmem:[%s4 + $0x78] sm:$0xff] %v409
  $region25: #{gnn_forward.3} parent=0 // pred_fallthru
    _
  // Predicated region
  $region26: #{gnn_forward.3} parent=0 // pred_check
    _
  $region27: #{gnn_forward.3} parent=0 // pred_check_branch
    %428 = sbr.rel (0) target = $region29
  $region28: #{gnn_forward.3} parent=0 // pred_region
    _
  $region29: #{gnn_forward.3} parent=0 // pred_fallthru
    _
  // Predicated region
  $region30: #{gnn_forward.3} parent=0 // pred_check
    _
  $region31: #{gnn_forward.3} parent=0 // pred_check_branch
    %430 = sbr.rel (0) target = $region33
  $region32: #{gnn_forward.3} parent=0 // pred_region
    _
  $region33: #{gnn_forward.3} parent=0 // pred_fallthru
    _

// kernel: gnn_forward.2
$region0: #{gnn_forward.2}
  #allocation0 [shape = 'u32[]', space=smem, size = 0x4, offset = 0x4, fixed_abs, tag = 'smem constant byte address 0x4 - core index']
  #allocation1 [shape = 'u32[72,128]{1,0:T(1,128)}', space=vmem, size = 0x9000, scoped, tag = 'internal scratch']
  #allocation2 [shape = 'f32[128,128]{1,0:T(8,128)}', space=vmem, size = 0x10000, scoped, tag = 'scratch operand']
  %s0 = inlined_call_operand.vmem [shape: bf16[128,128], index: 0, kind: input, shape index: {}]
  %s1 = inlined_call_operand.vmem [shape: bf16[128,128], index: 1, kind: input, shape index: {}]
  %s2 = inlined_call_operand.vmem [shape: bf16[128,128], index: 2, kind: input, shape index: {}]
  %s3 = inlined_call_operand.vmem [shape: f32[1,128], index: 3, kind: input, shape index: {}]
  %s4 = inlined_call_operand.vmem [shape: bf16[128,128], index: 4, kind: output, shape index: {}]
  %s5 = sld [smem:[#allocation0]]
  $region34: #{gnn_forward.2} parent=0
    _
  %s7 = ssub.s32 1, %s5
  %s8 = scalar_select 0, %s7, %s5
  // Predicated region
  $region2: #{gnn_forward.2} parent=0 // pred_check
    _
  $region3: #{gnn_forward.2} parent=0 // pred_check_branch
    %10 = sbr.rel (0) target = $region5
  $region4: #{gnn_forward.2} parent=0 // pred_region
    _
  $region5: #{gnn_forward.2} parent=0 // pred_fallthru
    _
  // Predicated region
  $region6: #{gnn_forward.2} parent=0 // pred_check
    _
  $region7: #{gnn_forward.2} parent=0 // pred_check_branch
    %12 = sbr.rel (0) target = $region9
  $region8: #{gnn_forward.2} parent=0 // pred_region
    _
  $region9: #{gnn_forward.2} parent=0 // pred_fallthru
    _
  // Predicated region
  $region10: #{gnn_forward.2} parent=0 // pred_check
    _
  $region11: #{gnn_forward.2} parent=0 // pred_check_branch
    %14 = sbr.rel (0) target = $region13
  $region12: #{gnn_forward.2} parent=0 // pred_region
    _
  $region13: #{gnn_forward.2} parent=0 // pred_fallthru
    _
  // Predicated region
  $region14: #{gnn_forward.2} parent=0 // pred_check
    _
  $region15: #{gnn_forward.2} parent=0 // pred_check_branch
    %16 = sbr.rel (0) target = $region17
  $region16: #{gnn_forward.2} parent=0 // pred_region
    _
  $region17: #{gnn_forward.2} parent=0 // pred_fallthru
    _
  %p17 = scmp.eq.s32.totalorder 0, 0
  // Predicated region
  $region18: #{gnn_forward.2} parent=0 // pred_check
    %p18 = pneg %p17
  $region19: #{gnn_forward.2} parent=0 // pred_check_branch
    %20 = sbr.rel (%p18) target = $region21
  $region20: #{gnn_forward.2} parent=0 // pred_region
    %21 = vst [vmem:[#allocation2] sm:$0xff] 0.0
    %22 = vst [vmem:[#allocation2 + $0x8] sm:$0xff] 0.0
    %23 = vst [vmem:[#allocation2 + $0x10] sm:$0xff] 0.0
    %24 = vst [vmem:[#allocation2 + $0x18] sm:$0xff] 0.0
    %25 = vst [vmem:[#allocation2 + $0x20] sm:$0xff] 0.0
    %26 = vst [vmem:[#allocation2 + $0x28] sm:$0xff] 0.0
    %27 = vst [vmem:[#allocation2 + $0x30] sm:$0xff] 0.0
    %28 = vst [vmem:[#allocation2 + $0x38] sm:$0xff] 0.0
    %29 = vst [vmem:[#allocation2 + $0x40] sm:$0xff] 0.0
    %30 = vst [vmem:[#allocation2 + $0x48] sm:$0xff] 0.0
    %31 = vst [vmem:[#allocation2 + $0x50] sm:$0xff] 0.0
    %32 = vst [vmem:[#allocation2 + $0x58] sm:$0xff] 0.0
    %33 = vst [vmem:[#allocation2 + $0x60] sm:$0xff] 0.0
    %34 = vst [vmem:[#allocation2 + $0x68] sm:$0xff] 0.0
    %35 = vst [vmem:[#allocation2 + $0x70] sm:$0xff] 0.0
    %36 = vst [vmem:[#allocation2 + $0x78] sm:$0xff] 0.0
  $region21: #{gnn_forward.2} parent=0 // pred_fallthru
    _
  %s37 = smul.u32 0, 128
  %s38 = sshra.s32 %s37, 3
  %s39 = sand.u32 %s37, 7
  %s40 = smul.addr %s38, 4
  %s41 = scalar_lea.vmem %s1, %s40
  %v42 = vld [vmem:[%s41] sm:$0xf]
  %v43 = vld [vmem:[%s41 + $0x4] sm:$0xf]
  %v44 = vld [vmem:[%s41 + $0x8] sm:$0xf]
  %v45 = vld [vmem:[%s41 + $0xc] sm:$0xf]
  %v46 = vld [vmem:[%s41 + $0x10] sm:$0xf]
  %v47 = vld [vmem:[%s41 + $0x14] sm:$0xf]
  %v48 = vld [vmem:[%s41 + $0x18] sm:$0xf]
  %v49 = vld [vmem:[%s41 + $0x1c] sm:$0xf]
  %v50 = vld [vmem:[%s41 + $0x20] sm:$0xf]
  %v51 = vld [vmem:[%s41 + $0x24] sm:$0xf]
  %v52 = vld [vmem:[%s41 + $0x28] sm:$0xf]
  %v53 = vld [vmem:[%s41 + $0x2c] sm:$0xf]
  %v54 = vld [vmem:[%s41 + $0x30] sm:$0xf]
  %v55 = vld [vmem:[%s41 + $0x34] sm:$0xf]
  %v56 = vld [vmem:[%s41 + $0x38] sm:$0xf]
  %v57 = vld [vmem:[%s41 + $0x3c] sm:$0xf]
  %v58 = vld [vmem:[#allocation2] sm:$0xff]
  %v59 = vld [vmem:[#allocation2 + $0x8] sm:$0xff]
  %v60 = vld [vmem:[#allocation2 + $0x10] sm:$0xff]
  %v61 = vld [vmem:[#allocation2 + $0x18] sm:$0xff]
  %v62 = vld [vmem:[#allocation2 + $0x20] sm:$0xff]
  %v63 = vld [vmem:[#allocation2 + $0x28] sm:$0xff]
  %v64 = vld [vmem:[#allocation2 + $0x30] sm:$0xff]
  %v65 = vld [vmem:[#allocation2 + $0x38] sm:$0xff]
  %v66 = vld [vmem:[#allocation2 + $0x40] sm:$0xff]
  %v67 = vld [vmem:[#allocation2 + $0x48] sm:$0xff]
  %v68 = vld [vmem:[#allocation2 + $0x50] sm:$0xff]
  %v69 = vld [vmem:[#allocation2 + $0x58] sm:$0xff]
  %v70 = vld [vmem:[#allocation2 + $0x60] sm:$0xff]
  %v71 = vld [vmem:[#allocation2 + $0x68] sm:$0xff]
  %v72 = vld [vmem:[#allocation2 + $0x70] sm:$0xff]
  %v73 = vld [vmem:[#allocation2 + $0x78] sm:$0xff]
  %v74 = vld [vmem:[%s0] sm:$0xf]
  %v75 = vld [vmem:[%s0 + $0x4] sm:$0xf]
  %v76 = vld [vmem:[%s0 + $0x8] sm:$0xf]
  %v77 = vld [vmem:[%s0 + $0xc] sm:$0xf]
  %v78 = vld [vmem:[%s0 + $0x10] sm:$0xf]
  %v79 = vld [vmem:[%s0 + $0x14] sm:$0xf]
  %v80 = vld [vmem:[%s0 + $0x18] sm:$0xf]
  %v81 = vld [vmem:[%s0 + $0x1c] sm:$0xf]
  %v82 = vld [vmem:[%s0 + $0x20] sm:$0xf]
  %v83 = vld [vmem:[%s0 + $0x24] sm:$0xf]
  %v84 = vld [vmem:[%s0 + $0x28] sm:$0xf]
  %v85 = vld [vmem:[%s0 + $0x2c] sm:$0xf]
  %v86 = vld [vmem:[%s0 + $0x30] sm:$0xf]
  %v87 = vld [vmem:[%s0 + $0x34] sm:$0xf]
  %v88 = vld [vmem:[%s0 + $0x38] sm:$0xf]
  %v89 = vld [vmem:[%s0 + $0x3c] sm:$0xf]
  %v106 = vunpack.c.l.b16 %v74
  %v107 = vunpack.c.l.b16 %v75
  %v108 = vunpack.c.l.b16 %v76
  %v109 = vunpack.c.l.b16 %v77
  %v110 = vunpack.c.l.b16 %v78
  %v111 = vunpack.c.l.b16 %v79
  %v112 = vunpack.c.l.b16 %v80
  %v113 = vunpack.c.l.b16 %v81
  %v114 = vunpack.c.l.b16 %v82
  %v115 = vunpack.c.l.b16 %v83
  %v116 = vunpack.c.l.b16 %v84
  %v117 = vunpack.c.l.b16 %v85
  %v118 = vunpack.c.l.b16 %v86
  %v119 = vunpack.c.l.b16 %v87
  %v120 = vunpack.c.l.b16 %v88
  %v121 = vunpack.c.l.b16 %v89
  %v122 = vpack.c.b16 %v107, %v106
  %v123 = vpack.c.b16 %v109, %v108
  %v124 = vpack.c.b16 %v111, %v110
  %v125 = vpack.c.b16 %v113, %v112
  %v126 = vpack.c.b16 %v115, %v114
  %v127 = vpack.c.b16 %v117, %v116
  %v128 = vpack.c.b16 %v119, %v118
  %v129 = vpack.c.b16 %v121, %v120
  %v154 = vunpack.c.l.b16 %v42
  %v155 = vunpack.c.l.b16 %v43
  %v156 = vunpack.c.l.b16 %v44
  %v157 = vunpack.c.l.b16 %v45
  %v158 = vunpack.c.l.b16 %v46
  %v159 = vunpack.c.l.b16 %v47
  %v160 = vunpack.c.l.b16 %v48
  %v161 = vunpack.c.l.b16 %v49
  %v162 = vunpack.c.l.b16 %v50
  %v163 = vunpack.c.l.b16 %v51
  %v164 = vunpack.c.l.b16 %v52
  %v165 = vunpack.c.l.b16 %v53
  %v166 = vunpack.c.l.b16 %v54
  %v167 = vunpack.c.l.b16 %v55
  %v168 = vunpack.c.l.b16 %v56
  %v169 = vunpack.c.l.b16 %v57
  %v170 = vpack.c.b16 %v155, %v154
  %v171 = vpack.c.b16 %v157, %v156
  %v172 = vpack.c.b16 %v159, %v158
  %v173 = vpack.c.b16 %v161, %v160
  %v174 = vpack.c.b16 %v163, %v162
  %v175 = vpack.c.b16 %v165, %v164
  %v176 = vpack.c.b16 %v167, %v166
  %v177 = vpack.c.b16 %v169, %v168
  %186 = vmatpush.bf16.msra.mxu0 %v177
  %187 = vmatpush.bf16.msra.mxu0 %v176
  %188 = vmatpush.bf16.msra.mxu0 %v175
  %189 = vmatpush.bf16.msra.mxu0 %v174
  %190 = vmatpush.bf16.msra.mxu0 %v173
  %191 = vmatpush.bf16.msra.mxu0 %v172
  %192 = vmatpush.bf16.msra.mxu0 %v171
  %193 = vmatpush.bf16.msra.mxu0 %v170
  %194 = vmatmul.bf16.gmra.mxu0 %v122
  %v195 = vpop.f32.mrf.mxu0
  %v196 = vadd.f32 0.0, %v195
  %v197 = vpop.f32.mrf.mxu0
  %v198 = vadd.f32 0.0, %v197
  %199 = vmatmul.bf16.gmra.mxu0 %v123
  %v200 = vpop.f32.mrf.mxu0
  %v201 = vadd.f32 0.0, %v200
  %v202 = vpop.f32.mrf.mxu0
  %v203 = vadd.f32 0.0, %v202
  %204 = vmatmul.bf16.gmra.mxu0 %v124
  %v205 = vpop.f32.mrf.mxu0
  %v206 = vadd.f32 0.0, %v205
  %v207 = vpop.f32.mrf.mxu0
  %v208 = vadd.f32 0.0, %v207
  %209 = vmatmul.bf16.gmra.mxu0 %v125
  %v210 = vpop.f32.mrf.mxu0
  %v211 = vadd.f32 0.0, %v210
  %v212 = vpop.f32.mrf.mxu0
  %v213 = vadd.f32 0.0, %v212
  %214 = vmatmul.bf16.gmra.mxu0 %v126
  %v215 = vpop.f32.mrf.mxu0
  %v216 = vadd.f32 0.0, %v215
  %v217 = vpop.f32.mrf.mxu0
  %v218 = vadd.f32 0.0, %v217
  %219 = vmatmul.bf16.gmra.mxu0 %v127
  %v220 = vpop.f32.mrf.mxu0
  %v221 = vadd.f32 0.0, %v220
  %v222 = vpop.f32.mrf.mxu0
  %v223 = vadd.f32 0.0, %v222
  %224 = vmatmul.bf16.gmra.mxu0 %v128
  %v225 = vpop.f32.mrf.mxu0
  %v226 = vadd.f32 0.0, %v225
  %v227 = vpop.f32.mrf.mxu0
  %v228 = vadd.f32 0.0, %v227
  %229 = vmatmul.bf16.gmra.mxu0 %v129
  %v230 = vpop.f32.mrf.mxu0
  %v231 = vadd.f32 0.0, %v230
  %v232 = vpop.f32.mrf.mxu0
  %v233 = vadd.f32 0.0, %v232
  %234 = vdwg.mxu0
  %v235 = vadd.f32 %v58, %v196
  %v236 = vadd.f32 %v59, %v198
  %v237 = vadd.f32 %v60, %v201
  %v238 = vadd.f32 %v61, %v203
  %v239 = vadd.f32 %v62, %v206
  %v240 = vadd.f32 %v63, %v208
  %v241 = vadd.f32 %v64, %v211
  %v242 = vadd.f32 %v65, %v213
  %v243 = vadd.f32 %v66, %v216
  %v244 = vadd.f32 %v67, %v218
  %v245 = vadd.f32 %v68, %v221
  %v246 = vadd.f32 %v69, %v223
  %v247 = vadd.f32 %v70, %v226
  %v248 = vadd.f32 %v71, %v228
  %v249 = vadd.f32 %v72, %v231
  %v250 = vadd.f32 %v73, %v233
  %251 = vst [vmem:[#allocation2] sm:$0xff] %v235
  %252 = vst [vmem:[#allocation2 + $0x8] sm:$0xff] %v236
  %253 = vst [vmem:[#allocation2 + $0x10] sm:$0xff] %v237
  %254 = vst [vmem:[#allocation2 + $0x18] sm:$0xff] %v238
  %255 = vst [vmem:[#allocation2 + $0x20] sm:$0xff] %v239
  %256 = vst [vmem:[#allocation2 + $0x28] sm:$0xff] %v240
  %257 = vst [vmem:[#allocation2 + $0x30] sm:$0xff] %v241
  %258 = vst [vmem:[#allocation2 + $0x38] sm:$0xff] %v242
  %259 = vst [vmem:[#allocation2 + $0x40] sm:$0xff] %v243
  %260 = vst [vmem:[#allocation2 + $0x48] sm:$0xff] %v244
  %261 = vst [vmem:[#allocation2 + $0x50] sm:$0xff] %v245
  %262 = vst [vmem:[#allocation2 + $0x58] sm:$0xff] %v246
  %263 = vst [vmem:[#allocation2 + $0x60] sm:$0xff] %v247
  %264 = vst [vmem:[#allocation2 + $0x68] sm:$0xff] %v248
  %265 = vst [vmem:[#allocation2 + $0x70] sm:$0xff] %v249
  %266 = vst [vmem:[#allocation2 + $0x78] sm:$0xff] %v250
  // Predicated region
  $region22: #{gnn_forward.2} parent=0 // pred_check
    %p267 = pneg %p17
  $region23: #{gnn_forward.2} parent=0 // pred_check_branch
    %269 = sbr.rel (%p267) target = $region25
  $region24: #{gnn_forward.2} parent=0 // pred_region
    %v270 = vld [vmem:[#allocation2] sm:$0xff]
    %v271 = vld [vmem:[#allocation2 + $0x8] sm:$0xff]
    %v272 = vld [vmem:[#allocation2 + $0x10] sm:$0xff]
    %v273 = vld [vmem:[#allocation2 + $0x18] sm:$0xff]
    %v274 = vld [vmem:[#allocation2 + $0x20] sm:$0xff]
    %v275 = vld [vmem:[#allocation2 + $0x28] sm:$0xff]
    %v276 = vld [vmem:[#allocation2 + $0x30] sm:$0xff]
    %v277 = vld [vmem:[#allocation2 + $0x38] sm:$0xff]
    %v278 = vld [vmem:[#allocation2 + $0x40] sm:$0xff]
    %v279 = vld [vmem:[#allocation2 + $0x48] sm:$0xff]
    %v280 = vld [vmem:[#allocation2 + $0x50] sm:$0xff]
    %v281 = vld [vmem:[#allocation2 + $0x58] sm:$0xff]
    %v282 = vld [vmem:[#allocation2 + $0x60] sm:$0xff]
    %v283 = vld [vmem:[#allocation2 + $0x68] sm:$0xff]
    %v284 = vld [vmem:[#allocation2 + $0x70] sm:$0xff]
    %v285 = vld [vmem:[#allocation2 + $0x78] sm:$0xff]
    %v286 = vpack.c.bf16 %v271, %v270
    %v287 = vpack.c.bf16 %v273, %v272
    %v288 = vpack.c.bf16 %v275, %v274
    %v289 = vpack.c.bf16 %v277, %v276
    %v290 = vpack.c.bf16 %v279, %v278
    %v291 = vpack.c.bf16 %v281, %v280
    %v292 = vpack.c.bf16 %v283, %v282
    %v293 = vpack.c.bf16 %v285, %v284
    %v294 = vld [vmem:[%s2] sm:$0xf]
    %v295 = vld [vmem:[%s2 + $0x4] sm:$0xf]
    %v296 = vld [vmem:[%s2 + $0x8] sm:$0xf]
    %v297 = vld [vmem:[%s2 + $0xc] sm:$0xf]
    %v298 = vld [vmem:[%s2 + $0x10] sm:$0xf]
    %v299 = vld [vmem:[%s2 + $0x14] sm:$0xf]
    %v300 = vld [vmem:[%s2 + $0x18] sm:$0xf]
    %v301 = vld [vmem:[%s2 + $0x1c] sm:$0xf]
    %v302 = vld [vmem:[%s2 + $0x20] sm:$0xf]
    %v303 = vld [vmem:[%s2 + $0x24] sm:$0xf]
    %v304 = vld [vmem:[%s2 + $0x28] sm:$0xf]
    %v305 = vld [vmem:[%s2 + $0x2c] sm:$0xf]
    %v306 = vld [vmem:[%s2 + $0x30] sm:$0xf]
    %v307 = vld [vmem:[%s2 + $0x34] sm:$0xf]
    %v308 = vld [vmem:[%s2 + $0x38] sm:$0xf]
    %v309 = vld [vmem:[%s2 + $0x3c] sm:$0xf]
    %v310 = vld [vmem:[%s3] sm:$0x1]
    %v312 = vperm.slane %v310, 0
    %v330 = vunpack.c.l.b16 %v294
    %v331 = vunpack.c.l.b16 %v295
    %v332 = vunpack.c.l.b16 %v296
    %v333 = vunpack.c.l.b16 %v297
    %v334 = vunpack.c.l.b16 %v298
    %v335 = vunpack.c.l.b16 %v299
    %v336 = vunpack.c.l.b16 %v300
    %v337 = vunpack.c.l.b16 %v301
    %v338 = vunpack.c.l.b16 %v302
    %v339 = vunpack.c.l.b16 %v303
    %v340 = vunpack.c.l.b16 %v304
    %v341 = vunpack.c.l.b16 %v305
    %v342 = vunpack.c.l.b16 %v306
    %v343 = vunpack.c.l.b16 %v307
    %v344 = vunpack.c.l.b16 %v308
    %v345 = vunpack.c.l.b16 %v309
    %v346 = vpack.c.b16 %v331, %v330
    %v347 = vpack.c.b16 %v333, %v332
    %v348 = vpack.c.b16 %v335, %v334
    %v349 = vpack.c.b16 %v337, %v336
    %v350 = vpack.c.b16 %v339, %v338
    %v351 = vpack.c.b16 %v341, %v340
    %v352 = vpack.c.b16 %v343, %v342
    %v353 = vpack.c.b16 %v345, %v344
    %362 = vmatpush.bf16.msra.mxu0 %v353
    %363 = vmatpush.bf16.msra.mxu0 %v352
    %364 = vmatpush.bf16.msra.mxu0 %v351
    %365 = vmatpush.bf16.msra.mxu0 %v350
    %366 = vmatpush.bf16.msra.mxu0 %v349
    %367 = vmatpush.bf16.msra.mxu0 %v348
    %368 = vmatpush.bf16.msra.mxu0 %v347
    %369 = vmatpush.bf16.msra.mxu0 %v346
    %370 = vmatmul.bf16.gmra.mxu0 %v286
    %v371 = vpop.f32.mrf.mxu0
    %v372 = vadd.f32 %v312, %v371
    %v373 = vpop.f32.mrf.mxu0
    %v374 = vadd.f32 %v312, %v373
    %375 = vmatmul.bf16.gmra.mxu0 %v287
    %v376 = vpop.f32.mrf.mxu0
    %v377 = vadd.f32 %v312, %v376
    %v378 = vpop.f32.mrf.mxu0
    %v379 = vadd.f32 %v312, %v378
    %380 = vmatmul.bf16.gmra.mxu0 %v288
    %v381 = vpop.f32.mrf.mxu0
    %v382 = vadd.f32 %v312, %v381
    %v383 = vpop.f32.mrf.mxu0
    %v384 = vadd.f32 %v312, %v383
    %385 = vmatmul.bf16.gmra.mxu0 %v289
    %v386 = vpop.f32.mrf.mxu0
    %v387 = vadd.f32 %v312, %v386
    %v388 = vpop.f32.mrf.mxu0
    %v389 = vadd.f32 %v312, %v388
    %390 = vmatmul.bf16.gmra.mxu0 %v290
    %v391 = vpop.f32.mrf.mxu0
    %v392 = vadd.f32 %v312, %v391
    %v393 = vpop.f32.mrf.mxu0
    %v394 = vadd.f32 %v312, %v393
    %395 = vmatmul.bf16.gmra.mxu0 %v291
    %v396 = vpop.f32.mrf.mxu0
    %v397 = vadd.f32 %v312, %v396
    %v398 = vpop.f32.mrf.mxu0
    %v399 = vadd.f32 %v312, %v398
    %400 = vmatmul.bf16.gmra.mxu0 %v292
    %v401 = vpop.f32.mrf.mxu0
    %v402 = vadd.f32 %v312, %v401
    %v403 = vpop.f32.mrf.mxu0
    %v404 = vadd.f32 %v312, %v403
    %405 = vmatmul.bf16.gmra.mxu0 %v293
    %v406 = vpop.f32.mrf.mxu0
    %v407 = vadd.f32 %v312, %v406
    %v408 = vpop.f32.mrf.mxu0
    %v409 = vadd.f32 %v312, %v408
    %410 = vdwg.mxu0
    %v411 = vmax.f32 %v372, 0.0
    %v412 = vmax.f32 %v374, 0.0
    %v413 = vmax.f32 %v377, 0.0
    %v414 = vmax.f32 %v379, 0.0
    %v415 = vmax.f32 %v382, 0.0
    %v416 = vmax.f32 %v384, 0.0
    %v417 = vmax.f32 %v387, 0.0
    %v418 = vmax.f32 %v389, 0.0
    %v419 = vmax.f32 %v392, 0.0
    %v420 = vmax.f32 %v394, 0.0
    %v421 = vmax.f32 %v397, 0.0
    %v422 = vmax.f32 %v399, 0.0
    %v423 = vmax.f32 %v402, 0.0
    %v424 = vmax.f32 %v404, 0.0
    %v425 = vmax.f32 %v407, 0.0
    %v426 = vmax.f32 %v409, 0.0
    %v427 = vpack.c.bf16 %v411, %v411
    %v428 = vpack.c.bf16 %v412, %v412
    %v429 = vpack.c.bf16 %v413, %v413
    %v430 = vpack.c.bf16 %v414, %v414
    %v431 = vpack.c.bf16 %v415, %v415
    %v432 = vpack.c.bf16 %v416, %v416
    %v433 = vpack.c.bf16 %v417, %v417
    %v434 = vpack.c.bf16 %v418, %v418
    %v435 = vpack.c.bf16 %v419, %v419
    %v436 = vpack.c.bf16 %v420, %v420
    %v437 = vpack.c.bf16 %v421, %v421
    %v438 = vpack.c.bf16 %v422, %v422
    %v439 = vpack.c.bf16 %v423, %v423
    %v440 = vpack.c.bf16 %v424, %v424
    %v441 = vpack.c.bf16 %v425, %v425
    %v442 = vpack.c.bf16 %v426, %v426
    %443 = vst [vmem:[%s4] sm:$0xf] %v427
    %444 = vst [vmem:[%s4 + $0x4] sm:$0xf] %v428
    %445 = vst [vmem:[%s4 + $0x8] sm:$0xf] %v429
    %446 = vst [vmem:[%s4 + $0xc] sm:$0xf] %v430
    %447 = vst [vmem:[%s4 + $0x10] sm:$0xf] %v431
    %448 = vst [vmem:[%s4 + $0x14] sm:$0xf] %v432
    %449 = vst [vmem:[%s4 + $0x18] sm:$0xf] %v433
    %450 = vst [vmem:[%s4 + $0x1c] sm:$0xf] %v434
    %451 = vst [vmem:[%s4 + $0x20] sm:$0xf] %v435
    %452 = vst [vmem:[%s4 + $0x24] sm:$0xf] %v436
    %453 = vst [vmem:[%s4 + $0x28] sm:$0xf] %v437
    %454 = vst [vmem:[%s4 + $0x2c] sm:$0xf] %v438
    %455 = vst [vmem:[%s4 + $0x30] sm:$0xf] %v439
    %456 = vst [vmem:[%s4 + $0x34] sm:$0xf] %v440
    %457 = vst [vmem:[%s4 + $0x38] sm:$0xf] %v441
    %458 = vst [vmem:[%s4 + $0x3c] sm:$0xf] %v442
  $region25: #{gnn_forward.2} parent=0 // pred_fallthru
    _
  // Predicated region
  $region26: #{gnn_forward.2} parent=0 // pred_check
    _
  $region27: #{gnn_forward.2} parent=0 // pred_check_branch
    %460 = sbr.rel (0) target = $region29
  $region28: #{gnn_forward.2} parent=0 // pred_region
    _
  $region29: #{gnn_forward.2} parent=0 // pred_fallthru
    _
  // Predicated region
  $region30: #{gnn_forward.2} parent=0 // pred_check
    _
  $region31: #{gnn_forward.2} parent=0 // pred_check_branch
    %462 = sbr.rel (0) target = $region33
  $region32: #{gnn_forward.2} parent=0 // pred_region
    _
  $region33: #{gnn_forward.2} parent=0 // pred_fallthru
    _

</llo_original>
